<compile_context>
chip_gen: v6e
topology: v6e:2x2x1
jax: 0.10.0
libtpu: 0.0.40
codegen_flags: <defaults>
</compile_context>

<pallas_src>
import functools

import jax
import jax.numpy as jnp
from jax.experimental import pallas as pl
from jax.experimental.pallas import tpu as pltpu


def _round_up(x, m):
    return ((x + m - 1) // m) * m


def mlp_kernel(x_ref, w1_ref, b1_ref, w2_ref, b2_ref, o_ref):
    # fc1 + ReLU. x is cast to the weight dtype in-kernel (no-op for f32),
    # accumulation always in f32.
    x = x_ref[...].astype(w1_ref.dtype)
    h = jnp.dot(x, w1_ref[...], preferred_element_type=jnp.float32)
    h = jnp.maximum(h + b1_ref[...], 0.0)          # bias + ReLU in f32 (VPU-safe on v5e)
    # fc2: narrow (out_dim) output stored directly -- 8 B/row of HBM writeback
    # instead of a 128-lane zero-padded slab + trailing slice pass.
    y = jnp.dot(h.astype(w2_ref.dtype), w2_ref[...],
                preferred_element_type=jnp.float32)
    o_ref[...] = (y + b2_ref[...]).astype(o_ref.dtype)


def prepare_params(w1, b1, w2, b2, compute_dtype=jnp.float32):
    """One-time parameter prep (hoisted out of the per-step forward):
    reshape PyTorch-style 1-D biases to (1, N) and cast weights to the MXU
    input dtype (bf16 halves weight/x read bytes and is MXU-native on
    v5e/v6e/v7x; biases stay f32)."""
    w1 = jnp.asarray(w1).astype(compute_dtype)
    w2 = jnp.asarray(w2).astype(compute_dtype)
    b1 = jnp.asarray(b1, jnp.float32).reshape(1, -1)
    b2 = jnp.asarray(b2, jnp.float32).reshape(1, -1)
    return w1, b1, w2, b2


@functools.partial(jax.jit, static_argnames=("block_m",))
def network_forward(x, w1, b1, w2, b2, *, block_m=2048):
    """Forward pass of Network: relu(x @ w1 + b1) @ w2 + b2.

    NOTE: the bf16 path (weights prepped with compute_dtype=bfloat16) rounds
    the matmul inputs to bf16 and is not bit-equivalent to the f32 PyTorch
    module; accumulation, bias add and ReLU stay f32.
    """
    B, in_dim = x.shape
    hidden = w1.shape[1]
    out_dim = w2.shape[1]
    assert w1.shape == (in_dim, hidden)
    assert w2.shape == (hidden, out_dim)
    assert b1.shape == (1, hidden) and b2.shape == (1, out_dim)

    # Batch tile: biggest tile that fits (bandwidth-bound kernel), multiple of
    # 16 (keeps bf16 sublane pairs packed, satisfies f32 (8,128) tiling).
    bm = min(block_m, _round_up(B, 16))
    if B >= 32 and pl.cdiv(B, bm) < 2:
        # v7x has 2 TensorCores: make sure the "parallel" grid has >= 2
        # balanced tiles.  Harmless (one extra tiny step) on v5e/v6e.
        bm = _round_up(pl.cdiv(B, 2), 16)
    grid = (pl.cdiv(B, bm),)   # ragged final block handled by Pallas masking

    out = pl.pallas_call(
        mlp_kernel,
        out_shape=jax.ShapeDtypeStruct((B, out_dim), jnp.float32),
        grid_spec=pltpu.PrefetchScalarGridSpec(
            num_scalar_prefetch=0,
            grid=grid,
            in_specs=[
                # x tile streams over the batch grid axis (double-buffered)
                pl.BlockSpec((bm, in_dim), lambda i: (i, 0)),
                # weights / biases: full arrays, VMEM-resident across steps
                pl.BlockSpec((in_dim, hidden), lambda i: (0, 0)),
                pl.BlockSpec((1, hidden), lambda i: (0, 0)),
                pl.BlockSpec((hidden, out_dim), lambda i: (0, 0)),
                pl.BlockSpec((1, out_dim), lambda i: (0, 0)),
            ],
            out_specs=pl.BlockSpec((bm, out_dim), lambda i: (i, 0)),
        ),
        compiler_params=pltpu.CompilerParams(
            # independent batch tiles -> shard across both TCs on v7x
            dimension_semantics=("parallel",)),
    )(x, w1, b1, w2, b2)
    return out


def init_params(key, input_dim, hidden_dim, out_dim=2):
    # Mimics nn.Linear default init: U(-1/sqrt(fan_in), 1/sqrt(fan_in)).
    # Weights stored as [in, out]; biases 1-D like PyTorch.
    k1, k2, k3, k4 = jax.random.split(key, 4)
    bnd1 = 1.0 / jnp.sqrt(input_dim)
    bnd2 = 1.0 / jnp.sqrt(hidden_dim)
    w1 = jax.random.uniform(k1, (input_dim, hidden_dim), jnp.float32, -bnd1, bnd1)
    b1 = jax.random.uniform(k2, (hidden_dim,), jnp.float32, -bnd1, bnd1)
    w2 = jax.random.uniform(k3, (hidden_dim, out_dim), jnp.float32, -bnd2, bnd2)
    b2 = jax.random.uniform(k4, (out_dim,), jnp.float32, -bnd2, bnd2)
    return w1, b1, w2, b2


if __name__ == "__main__":
    key = jax.random.PRNGKey(0)
    k_x, k_p = jax.random.split(key)

    batch, input_dim, hidden_dim, out_dim = 8, 32, 32, 2
    x = jax.random.normal(k_x, (batch, input_dim), jnp.float32)
    w1, b1, w2, b2 = init_params(k_p, input_dim, hidden_dim, out_dim)

    ref = jnp.maximum(x @ w1 + b1, 0.0) @ w2 + b2

    # f32 MXU-input path: exact semantics of the PyTorch module
    p_f32 = prepare_params(w1, b1, w2, b2, compute_dtype=jnp.float32)
    out = jax.block_until_ready(network_forward(x, *p_f32))
    assert out.shape == (batch, out_dim)
    assert jnp.allclose(out, ref, atol=1e-5), "f32 path mismatch vs reference"

    # bf16 MXU-input path (x cast in-kernel, f32 accumulation/bias/ReLU)
    p_bf16 = prepare_params(w1, b1, w2, b2, compute_dtype=jnp.bfloat16)
    out_bf16 = jax.block_until_ready(network_forward(x, *p_bf16))
    assert out_bf16.shape == (batch, out_dim)
    assert jnp.allclose(out_bf16, ref, atol=1e-1, rtol=5e-2), \
        "bf16 path mismatch vs reference"

    # larger ragged batch: grid > 1, no wrapper-side padding, masked last block
    xb = jax.random.normal(k_x, (200, input_dim), jnp.float32)
    refb = jnp.maximum(xb @ w1 + b1, 0.0) @ w2 + b2
    outb = jax.block_until_ready(network_forward(xb, *p_f32, block_m=64))
    assert outb.shape == (200, out_dim)
    assert jnp.allclose(outb, refb, atol=1e-5), "tiled-batch path mismatch"

    print("KERNEL_OK")
</pallas_src>

<mosaic_0001>
module attributes {stable_mosaic.version = 11 : i64} {
  func.func @mlp_kernel(%arg0: i32, %arg1: memref<16x32xf32, #tpu.memory_space<vmem>>, %arg2: memref<32x32xf32, #tpu.memory_space<vmem>>, %arg3: memref<1x32xf32, #tpu.memory_space<vmem>>, %arg4: memref<32x2xf32, #tpu.memory_space<vmem>>, %arg5: memref<1x2xf32, #tpu.memory_space<vmem>>, %arg6: memref<16x2xf32, #tpu.memory_space<vmem>>) attributes {dimension_semantics = [#tpu.dimension_semantics<parallel>], iteration_bounds = array<i64: 1>, scalar_prefetch = 0 : i64, scratch_operands = 0 : i64, tpu.core_type = #tpu.core_type<tc>, window_params = [{transform_indices = @transform_0, window_bounds = array<i64: 16, 32>}, {pipeline_mode = #tpu.pipeline_mode<synchronous>, transform_indices = @transform_1, window_bounds = array<i64: 32, 32>}, {pipeline_mode = #tpu.pipeline_mode<synchronous>, transform_indices = @transform_2, window_bounds = array<i64: 1, 32>}, {pipeline_mode = #tpu.pipeline_mode<synchronous>, transform_indices = @transform_3, window_bounds = array<i64: 32, 2>}, {pipeline_mode = #tpu.pipeline_mode<synchronous>, transform_indices = @transform_4, window_bounds = array<i64: 1, 2>}, {transform_indices = @transform_5, window_bounds = array<i64: 16, 2>}]} {
    %c0 = arith.constant 0 : index
    %c0_0 = arith.constant 0 : index
    %0 = vector.load %arg1[%c0, %c0_0] : memref<16x32xf32, #tpu.memory_space<vmem>>, vector<16x32xf32>
    %c0_1 = arith.constant 0 : index
    %c0_2 = arith.constant 0 : index
    %1 = vector.load %arg2[%c0_1, %c0_2] : memref<32x32xf32, #tpu.memory_space<vmem>>, vector<32x32xf32>
    %cst = arith.constant dense<0.000000e+00> : vector<16x32xf32>
    %2 = tpu.matmul %0, %1, %cst {dimension_numbers = #tpu.dot_dimension_numbers<[1], [0], [0], [1], [0, 0, 1, 1], [], []>} : vector<16x32xf32>, vector<32x32xf32>, vector<16x32xf32> -> vector<16x32xf32>
    %c0_3 = arith.constant 0 : index
    %c0_4 = arith.constant 0 : index
    %3 = vector.load %arg3[%c0_3, %c0_4] : memref<1x32xf32, #tpu.memory_space<vmem>>, vector<1x32xf32>
    %4 = vector.broadcast %3 : vector<1x32xf32> to vector<16x32xf32>
    %5 = arith.addf %2, %4 : vector<16x32xf32>
    %cst_5 = arith.constant 0.000000e+00 : f32
    %6 = vector.broadcast %cst_5 : f32 to vector<16x32xf32>
    %7 = arith.maximumf %5, %6 : vector<16x32xf32>
    %c0_6 = arith.constant 0 : index
    %c0_7 = arith.constant 0 : index
    %8 = vector.load %arg4[%c0_6, %c0_7] : memref<32x2xf32, #tpu.memory_space<vmem>>, vector<32x2xf32>
    %cst_8 = arith.constant dense<0.000000e+00> : vector<16x2xf32>
    %9 = tpu.matmul %7, %8, %cst_8 {dimension_numbers = #tpu.dot_dimension_numbers<[1], [0], [0], [1], [0, 0, 1, 1], [], []>} : vector<16x32xf32>, vector<32x2xf32>, vector<16x2xf32> -> vector<16x2xf32>
    %c0_9 = arith.constant 0 : index
    %c0_10 = arith.constant 0 : index
    %10 = vector.load %arg5[%c0_9, %c0_10] : memref<1x2xf32, #tpu.memory_space<vmem>>, vector<1x2xf32>
    %11 = vector.broadcast %10 : vector<1x2xf32> to vector<16x2xf32>
    %12 = arith.addf %9, %11 : vector<16x2xf32>
    %c0_11 = arith.constant 0 : index
    %c0_12 = arith.constant 0 : index
    %13 = vector.load %arg6[%c0_11, %c0_12] : memref<16x2xf32, #tpu.memory_space<vmem>>, vector<16x2xf32>
    tpu.vector_store %arg6[%c0_11, %c0_12], %12 {strides = array<i32>} : memref<16x2xf32, #tpu.memory_space<vmem>>, vector<16x2xf32>,
    return
  }
  func.func @transform_0(%arg0: i32) -> (i32, i32) {
    %c0_i32 = arith.constant 0 : i32
    %c0_i32_0 = arith.constant 0 : i32
    return %arg0, %c0_i32 : i32, i32
  }
  func.func @transform_1(%arg0: i32) -> (i32, i32) {
    %c0_i32 = arith.constant 0 : i32
    %c0_i32_0 = arith.constant 0 : i32
    %c0_i32_1 = arith.constant 0 : i32
    return %c0_i32, %c0_i32_0 : i32, i32
  }
  func.func @transform_2(%arg0: i32) -> (i32, i32) {
    %c0_i32 = arith.constant 0 : i32
    %c0_i32_0 = arith.constant 0 : i32
    %c0_i32_1 = arith.constant 0 : i32
    return %c0_i32, %c0_i32_0 : i32, i32
  }
  func.func @transform_3(%arg0: i32) -> (i32, i32) {
    %c0_i32 = arith.constant 0 : i32
    %c0_i32_0 = arith.constant 0 : i32
    %c0_i32_1 = arith.constant 0 : i32
    return %c0_i32, %c0_i32_0 : i32, i32
  }
  func.func @transform_4(%arg0: i32) -> (i32, i32) {
    %c0_i32 = arith.constant 0 : i32
    %c0_i32_0 = arith.constant 0 : i32
    %c0_i32_1 = arith.constant 0 : i32
    return %c0_i32, %c0_i32_0 : i32, i32
  }
  func.func @transform_5(%arg0: i32) -> (i32, i32) {
    %c0_i32 = arith.constant 0 : i32
    %c0_i32_0 = arith.constant 0 : i32
    return %arg0, %c0_i32 : i32, i32
  }
}

</mosaic_0001>

<llo_original>
// kernel: network_forward.1
$region0: #{network_forward.1}
  #allocation0 [shape = 'u32[]', space=smem, size = 0x4, offset = 0x4, fixed_abs, tag = 'smem constant byte address 0x4 - core index']
  #allocation1 [shape = 'u32[144,128]{1,0:T(1,128)}', space=vmem, size = 0x12000, scoped, tag = 'internal scratch']
  %s0 = inlined_call_operand.hbm [shape: f32[8,32], index: 0, kind: input, shape index: {}]
  %s1 = inlined_call_operand.vmem [shape: f32[32,32], index: 1, kind: input, shape index: {}]
  %s2 = inlined_call_operand.vmem [shape: f32[1,32], index: 2, kind: input, shape index: {}]
  %s3 = inlined_call_operand.vmem [shape: f32[32,2], index: 3, kind: input, shape index: {}]
  %s4 = inlined_call_operand.vmem [shape: f32[1,2], index: 4, kind: input, shape index: {}]
  %s5 = inlined_call_operand.vmem [shape: f32[8,2], index: 5, kind: output, shape index: {}]
  %s6 = sld [smem:[#allocation0]]
  $region68: #{network_forward.1} parent=0
    _
  %s8 = ssub.s32 1, %s6
  %s9 = scalar_select 0, %s8, %s6
  $region1: #{network_forward.1} parent=0
    #allocation2 [shape = 'u8[8192]{0}', space=vmem, size = 0x2000, scoped, tag = 'input window, operand 0, single buffered']
    #allocation3 [shape = 's32[1]{0}', space=sflag, size = 0x4, scoped, tag = 'scoped memory for network_forward.1']
    #allocation4 [shape = 'u8[8192]{0}', space=vmem, size = 0x2000, scoped, tag = 'output window, operand 0, single buffered']
    %10 = vsyncpa [#allocation3], 0
    // Predicated region
    $region2: #{network_forward.1} parent=1 // pred_check
      _
    $region3: #{network_forward.1} parent=1 // pred_check_branch
      %12 = sbr.rel (0) target = $region5
    $region4: #{network_forward.1} parent=1 // pred_region
      %s14 = ssub.s32 256, 128
      %15 = vsyncadd [#allocation3], %s14
      %s16 = sshll.u32 [#allocation2], 4
      %s17 = int_to_ptr.vmem [resolvable:$true] %s16
      %22 = dma.hbm_to_vmem [thread:$0]  %s0, 128, %s17, [#allocation3], 128, 128, 8
    $region5: #{network_forward.1} parent=1 // pred_fallthru
      _
    // Predicated region
    $region6: #{network_forward.1} parent=1 // pred_check
      _
    $region7: #{network_forward.1} parent=1 // pred_check_branch
      %24 = sbr.rel (0) target = $region9
    $region8: #{network_forward.1} parent=1 // pred_region
      _
    $region9: #{network_forward.1} parent=1 // pred_fallthru
      _
    // Predicated region
    $region10: #{network_forward.1} parent=1 // pred_check
      _
    $region11: #{network_forward.1} parent=1 // pred_check_branch
      %26 = sbr.rel (0) target = $region13
    $region12: #{network_forward.1} parent=1 // pred_region
      _
    $region13: #{network_forward.1} parent=1 // pred_fallthru
      _
    // Predicated region
    $region14: #{network_forward.1} parent=1 // pred_check
      _
    $region15: #{network_forward.1} parent=1 // pred_check_branch
      %28 = sbr.rel (0) target = $region17
    $region16: #{network_forward.1} parent=1 // pred_region
      _
    $region17: #{network_forward.1} parent=1 // pred_fallthru
      _
    // Predicated region
    $region18: #{network_forward.1} parent=1 // pred_check
      _
    $region19: #{network_forward.1} parent=1 // pred_check_branch
      %30 = sbr.rel (0) target = $region21
    $region20: #{network_forward.1} parent=1 // pred_region
      _
    $region21: #{network_forward.1} parent=1 // pred_fallthru
      _
    // Predicated region
    $region22: #{network_forward.1} parent=1 // pred_check
      _
    $region23: #{network_forward.1} parent=1 // pred_check_branch
      %32 = sbr.rel (0) target = $region25
    $region24: #{network_forward.1} parent=1 // pred_region
      %33 = dma.done [#allocation3], 256
    $region25: #{network_forward.1} parent=1 // pred_fallthru
      _
    %v34 = vld [vmem:[#allocation2] sm:$0xff]
    %v35 = vld [vmem:[#allocation2 + $0x8] sm:$0xff]
    %v36 = vld [vmem:[%s1] sm:$0xff]
    %v37 = vld [vmem:[%s1 + $0x8] sm:$0xff]
    %v38 = vld [vmem:[%s1 + $0x10] sm:$0xff]
    %v39 = vld [vmem:[%s1 + $0x18] sm:$0xff]
    %v40 = vld [vmem:[%s2] sm:$0x1]
    %v42 = vlaneseq
    %v43 = vshrl.u32 %v42, 7
    %v44 = vsub.s32 0, %v43
    %v45 = vrot.slane %v40, %v44
    %vm47 = vcmask 261120
    %v49 = vsel %vm47, %v34, 0
    %v52 = vsel %vm47, %v35, 0
    %54 = vmatprep.subr.mxu0 0.0
    %55 = vmatpush1.msra.mxu0 0.0
    %56 = vmatprep.subr.mxu0 0.0
    %57 = vmatpush1.msra.mxu0 0.0
    %58 = vmatprep.subr.mxu0 0.0
    %59 = vmatpush1.msra.mxu0 0.0
    %60 = vmatprep.subr.mxu0 0.0
    %61 = vmatpush1.msra.mxu0 0.0
    %62 = vmatprep.subr.mxu0 0.0
    %63 = vmatpush1.msra.mxu0 0.0
    %64 = vmatprep.subr.mxu0 0.0
    %65 = vmatpush1.msra.mxu0 0.0
    %66 = vmatprep.subr.mxu0 0.0
    %67 = vmatpush1.msra.mxu0 0.0
    %68 = vmatprep.subr.mxu0 0.0
    %69 = vmatpush1.msra.mxu0 0.0
    %70 = vmatprep.subr.mxu0 0.0
    %71 = vmatpush1.msra.mxu0 0.0
    %72 = vmatprep.subr.mxu0 0.0
    %73 = vmatpush1.msra.mxu0 0.0
    %74 = vmatprep.subr.mxu0 0.0
    %75 = vmatpush1.msra.mxu0 0.0
    %76 = vmatprep.subr.mxu0 0.0
    %77 = vmatpush1.msra.mxu0 0.0
    %78 = vmatprep.subr.mxu0 0.0
    %79 = vmatpush1.msra.mxu0 %v39
    %80 = vmatprep.subr.mxu0 0.0
    %81 = vmatpush1.msra.mxu0 %v38
    %82 = vmatprep.subr.mxu0 0.0
    %83 = vmatpush1.msra.mxu0 %v37
    %84 = vmatprep.subr.mxu0 0.0
    %85 = vmatpush1.msra.mxu0 %v36
    %86 = vmatprep.subr.mxu0 0.0
    %87 = vmatpush2.msra.mxu0 0.0
    %88 = vmatprep.subr.mxu0 0.0
    %89 = vmatpush2.msra.mxu0 0.0
    %90 = vmatprep.subr.mxu0 0.0
    %91 = vmatpush2.msra.mxu0 0.0
    %92 = vmatprep.subr.mxu0 0.0
    %93 = vmatpush2.msra.mxu0 0.0
    %94 = vmatprep.subr.mxu0 0.0
    %95 = vmatpush2.msra.mxu0 0.0
    %96 = vmatprep.subr.mxu0 0.0
    %97 = vmatpush2.msra.mxu0 0.0
    %98 = vmatprep.subr.mxu0 0.0
    %99 = vmatpush2.msra.mxu0 0.0
    %100 = vmatprep.subr.mxu0 0.0
    %101 = vmatpush2.msra.mxu0 0.0
    %102 = vmatprep.subr.mxu0 0.0
    %103 = vmatpush2.msra.mxu0 0.0
    %104 = vmatprep.subr.mxu0 0.0
    %105 = vmatpush2.msra.mxu0 0.0
    %106 = vmatprep.subr.mxu0 0.0
    %107 = vmatpush2.msra.mxu0 0.0
    %108 = vmatprep.subr.mxu0 0.0
    %109 = vmatpush2.msra.mxu0 0.0
    %110 = vmatprep.subr.mxu0 0.0
    %111 = vmatpush2.msra.mxu0 0.0
    %112 = vmatprep.subr.mxu0 0.0
    %113 = vmatpush2.msra.mxu0 0.0
    %114 = vmatprep.subr.mxu0 0.0
    %115 = vmatpush2.msra.mxu0 0.0
    %116 = vmatprep.subr.mxu0 0.0
    %117 = vmatpush2.msra.mxu0 0.0
    %118 = vmatprep.mubr.f32.mxu0 0.0
    %119 = vmatmul.mubr.f32.gmra.mxu0 %v49
    %v120 = vpop.f32.mrf.mxu0
    %v121 = vadd.f32 %v45, %v120
    %v122 = vpop.f32.mrf.mxu0
    %123 = vmatprep.mubr.f32.mxu0 0.0
    %124 = vmatmul.mubr.f32.gmra.mxu0 %v52
    %v125 = vpop.f32.mrf.mxu0
    %v126 = vadd.f32 %v45, %v125
    %v127 = vpop.f32.mrf.mxu0
    %128 = vdwg.mxu0
    %v129 = vmax.f32 %v121, 0.0
    %v130 = vmax.f32 %v126, 0.0
    %v131 = vld [vmem:[%s3] sm:$0xff]
    %v132 = vld [vmem:[%s3 + $0x8] sm:$0xff]
    %v133 = vld [vmem:[%s3 + $0x10] sm:$0xff]
    %v134 = vld [vmem:[%s3 + $0x18] sm:$0xff]
    %v135 = vld [vmem:[%s4] sm:$0x1]
    %v137 = vlaneseq
    %v138 = vshrl.u32 %v137, 7
    %v139 = vsub.s32 0, %v138
    %v140 = vrot.slane %v135, %v139
    %v143 = vsel %vm47, %v129, 0
    %v146 = vsel %vm47, %v130, 0
    %148 = vmatprep.subr.mxu0 0.0
    %149 = vmatpush1.msra.mxu0 0.0
    %150 = vmatprep.subr.mxu0 0.0
    %151 = vmatpush1.msra.mxu0 0.0
    %152 = vmatprep.subr.mxu0 0.0
    %153 = vmatpush1.msra.mxu0 0.0
    %154 = vmatprep.subr.mxu0 0.0
    %155 = vmatpush1.msra.mxu0 0.0
    %156 = vmatprep.subr.mxu0 0.0
    %157 = vmatpush1.msra.mxu0 0.0
    %158 = vmatprep.subr.mxu0 0.0
    %159 = vmatpush1.msra.mxu0 0.0
    %160 = vmatprep.subr.mxu0 0.0
    %161 = vmatpush1.msra.mxu0 0.0
    %162 = vmatprep.subr.mxu0 0.0
    %163 = vmatpush1.msra.mxu0 0.0
    %164 = vmatprep.subr.mxu0 0.0
    %165 = vmatpush1.msra.mxu0 0.0
    %166 = vmatprep.subr.mxu0 0.0
    %167 = vmatpush1.msra.mxu0 0.0
    %168 = vmatprep.subr.mxu0 0.0
    %169 = vmatpush1.msra.mxu0 0.0
    %170 = vmatprep.subr.mxu0 0.0
    %171 = vmatpush1.msra.mxu0 0.0
    %172 = vmatprep.subr.mxu0 0.0
    %173 = vmatpush1.msra.mxu0 %v134
    %174 = vmatprep.subr.mxu0 0.0
    %175 = vmatpush1.msra.mxu0 %v133
    %176 = vmatprep.subr.mxu0 0.0
    %177 = vmatpush1.msra.mxu0 %v132
    %178 = vmatprep.subr.mxu0 0.0
    %179 = vmatpush1.msra.mxu0 %v131
    %180 = vmatprep.subr.mxu0 0.0
    %181 = vmatpush2.msra.mxu0 0.0
    %182 = vmatprep.subr.mxu0 0.0
    %183 = vmatpush2.msra.mxu0 0.0
    %184 = vmatprep.subr.mxu0 0.0
    %185 = vmatpush2.msra.mxu0 0.0
    %186 = vmatprep.subr.mxu0 0.0
    %187 = vmatpush2.msra.mxu0 0.0
    %188 = vmatprep.subr.mxu0 0.0
    %189 = vmatpush2.msra.mxu0 0.0
    %190 = vmatprep.subr.mxu0 0.0
    %191 = vmatpush2.msra.mxu0 0.0
    %192 = vmatprep.subr.mxu0 0.0
    %193 = vmatpush2.msra.mxu0 0.0
    %194 = vmatprep.subr.mxu0 0.0
    %195 = vmatpush2.msra.mxu0 0.0
    %196 = vmatprep.subr.mxu0 0.0
    %197 = vmatpush2.msra.mxu0 0.0
    %198 = vmatprep.subr.mxu0 0.0
    %199 = vmatpush2.msra.mxu0 0.0
    %200 = vmatprep.subr.mxu0 0.0
    %201 = vmatpush2.msra.mxu0 0.0
    %202 = vmatprep.subr.mxu0 0.0
    %203 = vmatpush2.msra.mxu0 0.0
    %204 = vmatprep.subr.mxu0 0.0
    %205 = vmatpush2.msra.mxu0 0.0
    %206 = vmatprep.subr.mxu0 0.0
    %207 = vmatpush2.msra.mxu0 0.0
    %208 = vmatprep.subr.mxu0 0.0
    %209 = vmatpush2.msra.mxu0 0.0
    %210 = vmatprep.subr.mxu0 0.0
    %211 = vmatpush2.msra.mxu0 0.0
    %212 = vmatprep.mubr.f32.mxu0 0.0
    %213 = vmatmul.mubr.f32.gmra.mxu0 %v143
    %v214 = vpop.f32.mrf.mxu0
    %v215 = vadd.f32 %v140, %v214
    %v216 = vpop.f32.mrf.mxu0
    %217 = vmatprep.mubr.f32.mxu0 0.0
    %218 = vmatmul.mubr.f32.gmra.mxu0 %v146
    %v219 = vpop.f32.mrf.mxu0
    %v220 = vadd.f32 %v140, %v219
    %v221 = vpop.f32.mrf.mxu0
    %222 = vdwg.mxu0
    %vm223 = vcmask 15360
    %224 = vst.msk [vmem:[#allocation4] sm:$0xff] %vm223, %v215
    %225 = vst.msk [vmem:[#allocation4 + $0x8] sm:$0xff] %vm223, %v220
    // Predicated region
    $region26: #{network_forward.1} parent=1 // pred_check
      _
    $region27: #{network_forward.1} parent=1 // pred_check_branch
      %227 = sbr.rel (0) target = $region29
    $region28: #{network_forward.1} parent=1 // pred_region
      // Predicated region
      $region30: #{network_forward.1} parent=28 // pred_check
        _
      $region31: #{network_forward.1} parent=28 // pred_check_branch
        %229 = sbr.rel (0) target = $region33
      $region32: #{network_forward.1} parent=28 // pred_region
        // Predicated region
        $region34: #{network_forward.1} parent=32 // pred_check
          _
        $region35: #{network_forward.1} parent=32 // pred_check_branch
          %231 = sbr.rel (0) target = $region37
        $region36: #{network_forward.1} parent=32 // pred_region
          // Predicated region
          $region49: #{network_forward.1} parent=36 // pred_check
            _
          $region50: #{network_forward.1} parent=36 // pred_check_branch
            %247 = sbr.rel (0) target = $region52
          $region51: #{network_forward.1} parent=36 // pred_region
            loop: start=0, step=1, limit=1
            $region53: #{network_forward.1} parent=51 // loop_pre_header
              _
            $region54: #{network_forward.1} parent=51 // loop_header
              %s249 = sphi 0, %s253
              %p250 = scmp.ge.s32.totalorder %s249, 1
              %s254 = sphi [#allocation4], [#allocation4]
              %s255 = sphi %s5, %s5
            $region55: #{network_forward.1} parent=51 // loop_header_branch
              %252 = sbr.rel (%p250) target = $region59
            $region56: #{network_forward.1} parent=51 // loop_body
              %v256 = vld [vmem:[%s254] sm:$0xff]
              %257 = vst [vmem:[%s255] sm:$0xff] %v256
            $region57: #{network_forward.1} parent=51 // loop_footer
              %s253 = sadd.s32 1, %s249
            $region58: #{network_forward.1} parent=51 // loop_footer_branch
              %248 = sbr.rel target = $region54
            $region59: #{network_forward.1} parent=51 // loop_exit
              _
          $region52: #{network_forward.1} parent=36 // pred_fallthru
            _
          // Predicated region
          $region60: #{network_forward.1} parent=36 // pred_check
            _
          $region61: #{network_forward.1} parent=36 // pred_check_branch
            %259 = sbr.rel target = $region63
          $region62: #{network_forward.1} parent=36 // pred_region
            _
          $region63: #{network_forward.1} parent=36 // pred_fallthru
            _
        $region37: #{network_forward.1} parent=32 // pred_fallthru
          _
        // Predicated region
        $region38: #{network_forward.1} parent=32 // pred_check
          _
        $region39: #{network_forward.1} parent=32 // pred_check_branch
          %233 = sbr.rel target = $region41
        $region40: #{network_forward.1} parent=32 // pred_region
          %s235 = ssub.s32 256, 1
          loop: start=0, step=1, limit=1
          $region42: #{network_forward.1} parent=40 // loop_pre_header
            _
          $region43: #{network_forward.1} parent=40 // loop_header
            %s237 = sphi 0, %s241
            %p238 = scmp.ge.s32.totalorder %s237, 1
            %s242 = sphi [#allocation4], [#allocation4]
            %s243 = sphi %s5, %s5
          $region44: #{network_forward.1} parent=40 // loop_header_branch
            %240 = sbr.rel (%p238) target = $region48
          $region45: #{network_forward.1} parent=40 // loop_body
            %v244 = vld [vmem:[%s242] sm:%s235]
            %245 = vst [vmem:[%s243] sm:%s235] %v244
          $region46: #{network_forward.1} parent=40 // loop_footer
            %s241 = sadd.s32 1, %s237
          $region47: #{network_forward.1} parent=40 // loop_footer_branch
            %236 = sbr.rel target = $region43
          $region48: #{network_forward.1} parent=40 // loop_exit
            _
        $region41: #{network_forward.1} parent=32 // pred_fallthru
          _
      $region33: #{network_forward.1} parent=28 // pred_fallthru
        _
      %260 = vnop
    $region29: #{network_forward.1} parent=1 // pred_fallthru
      _
    // Predicated region
    $region64: #{network_forward.1} parent=1 // pred_check
      _
    $region65: #{network_forward.1} parent=1 // pred_check_branch
      %262 = sbr.rel (0) target = $region67
    $region66: #{network_forward.1} parent=1 // pred_region
      _
    $region67: #{network_forward.1} parent=1 // pred_fallthru
      _
    %263 = vsyncpa [#allocation3], 1

</llo_original>
